<compile_context>
chip_gen: v7x
topology: tpu7x:2x2x1
jax: 0.10.0
libtpu: 0.0.40
codegen_flags: <defaults>
</compile_context>

<pallas_src>
import functools
import math

import jax
import jax.numpy as jnp
from jax.experimental import pallas as pl
from jax.experimental.pallas import tpu as pltpu


def _vmem_budget_bytes():
    """Per-generation VMEM budget (v7x: 64 MiB physical, v5e/v6e: 128 MiB)."""
    cap = 64 * 1024 * 1024
    try:
        info = pltpu.get_tpu_info()
        cap = int(getattr(info, "vmem_capacity_bytes", cap))
    except Exception:
        pass
    return max(16 * 1024 * 1024, cap // 2)


def _pick_row_tile(B, Kp1, D, vmem_budget):
    """Rows of `i` per grid step: as big as VMEM allows (large blocks amortize
    the ~0.35us/step pipeline overhead); must divide B so tiles are exact."""
    row_out = B * Kp1 * D * 4                       # one i-row of ONE f32 output
    per_i = 8 * row_out + 4 * Kp1 * D * 4           # 2 outs x dbl-buf + temps + inputs
    ti = max(1, min(B, vmem_budget // max(per_i, 1)))
    while B % ti:
        ti -= 1
    return ti


def _zsum_kernel(w2_ref, w1_ref, a2_ref, a1_ref, s1_ref, s2_ref, *, inv_T):
    """First-call-only pre-pass: global sum of exp(normalized relation / T).

    Reads only the small weight/anchor tensors; the big tensor is never written.
    Runs serially over the tile grid (shared (1,1) accumulators).
    """
    t = pl.program_id(0)

    @pl.when(t == 0)
    def _():
        s1_ref[...] = jnp.zeros_like(s1_ref)
        s2_ref[...] = jnp.zeros_like(s2_ref)

    def tile_sum(w_ref, a_ref):
        w = w_ref[...]                                   # (TI, K+1, D)
        a = a_ref[...]                                   # (B, D)
        rel = w[:, None, :, :] - a[None, :, None, :] + 1e-6   # (TI, B, K+1, D)
        ssq = jnp.sum(rel * rel, axis=-1, keepdims=True)
        inv = jax.lax.rsqrt(jnp.maximum(ssq, 1e-24))     # == 1 / max(||rel||, 1e-12)
        return jnp.sum(jnp.exp(rel * (inv * inv_T)))

    s1_ref[...] = s1_ref[...] + tile_sum(w2_ref, a2_ref)   # out_v1 path (memory_v2)
    s2_ref[...] = s2_ref[...] + tile_sum(w1_ref, a1_ref)   # out_v2 path (memory_v1)


def _relation_kernel(invz_ref, w2_ref, w1_ref, a2_ref, a1_ref,
                     o1_ref, o2_ref, *, inv_T):
    """Fused heavy pass over TI rows of i per grid step.

    out[i, j, k, :] = exp(normalize(weight[i,k,:] - anchor[j,:] + 1e-6) / T) / Z
    (division by Z folded in as a multiply by 1/Z read from SMEM).
    No accumulator -> grid axis is fully parallel (megacore-shardable).
    """
    def compute(w_ref, a_ref, inv_z):
        w = w_ref[...]                                   # (TI, K+1, D)
        a = a_ref[...]                                   # (B, D)
        rel = w[:, None, :, :] - a[None, :, None, :] + 1e-6   # (TI, B, K+1, D)
        ssq = jnp.sum(rel * rel, axis=-1, keepdims=True)
        inv = jax.lax.rsqrt(jnp.maximum(ssq, 1e-24))     # F.normalize(p=2, eps=1e-12)
        return jnp.exp(rel * (inv * inv_T)) * inv_z

    o1_ref[...] = compute(w2_ref, a2_ref, invz_ref[0])
    o2_ref[...] = compute(w1_ref, a1_ref, invz_ref[1])


def _mem_update_kernel(m1_ref, m2_ref, v1_ref, v2_ref, u1_ref, u2_ref, *, momentum):
    """Momentum blend of memory rows with new features + L2 renorm (both views)."""
    def upd(m_ref, v_ref):
        pos = momentum * m_ref[...] + (1.0 - momentum) * v_ref[...]
        ssq = jnp.sum(pos * pos, axis=-1, keepdims=True)
        return pos * jax.lax.rsqrt(ssq)                  # no eps clamp, as in PyTorch

    u1_ref[...] = upd(m1_ref, v1_ref)
    u2_ref[...] = upd(m2_ref, v2_ref)


def contrast_memory_forward(v1, v2, y, idx, memory_v1, memory_v2,
                            *, K, T=0.05, momentum=0.5, Z_v1=-1.0, Z_v2=-1.0):
    f32 = jnp.float32
    B, D = v1.shape
    outputSize = memory_v1.shape[0]
    Kp1 = K + 1
    inv_T = 1.0 / float(T)

    # --- glue: gather memory rows (index_select) ---
    anchor_v1 = memory_v1[y].astype(f32)                                   # (B, D)
    anchor_v2 = memory_v2[y].astype(f32)                                   # (B, D)
    weight_v1 = memory_v1[idx.reshape(-1)].reshape(B, Kp1, D).astype(f32)  # (B, K+1, D)
    weight_v2 = memory_v2[idx.reshape(-1)].reshape(B, Kp1, D).astype(f32)  # (B, K+1, D)

    vmem_budget = _vmem_budget_bytes()
    TI = _pick_row_tile(B, Kp1, D, vmem_budget)
    n_tiles = B // TI

    w_spec = pl.BlockSpec((TI, Kp1, D), lambda t: (t, 0, 0))
    a_spec = pl.BlockSpec((B, D), lambda t: (0, 0))
    o_spec = pl.BlockSpec((TI, B, Kp1, D), lambda t: (t, 0, 0, 0))

    # --- Z normalization constants (only computed on the first call, Z < 0) ---
    need_z1 = float(Z_v1) < 0.0
    need_z2 = float(Z_v2) < 0.0
    if need_z1 or need_z2:
        zsum_call = pl.pallas_call(
            functools.partial(_zsum_kernel, inv_T=inv_T),
            grid=(n_tiles,),
            in_specs=[w_spec, w_spec, a_spec, a_spec],
            out_specs=[
                pl.BlockSpec((1, 1), lambda t: (0, 0)),
                pl.BlockSpec((1, 1), lambda t: (0, 0)),
            ],
            out_shape=[jax.ShapeDtypeStruct((1, 1), f32),
                       jax.ShapeDtypeStruct((1, 1), f32)],
            compiler_params=pltpu.CompilerParams(
                dimension_semantics=("arbitrary",),
                vmem_limit_bytes=vmem_budget),
        )
        sum_v1, sum_v2 = zsum_call(weight_v2, weight_v1, anchor_v2, anchor_v1)
        numel = float(B * B * Kp1 * D)
        Z1 = (sum_v1[0, 0] / numel) * outputSize if need_z1 else jnp.asarray(Z_v1, f32)
        Z2 = (sum_v2[0, 0] / numel) * outputSize if need_z2 else jnp.asarray(Z_v2, f32)
    else:
        Z1 = jnp.asarray(Z_v1, f32)
        Z2 = jnp.asarray(Z_v2, f32)

    inv_z = jnp.stack([1.0 / Z1, 1.0 / Z2]).astype(f32)   # (2,) scalars -> SMEM

    # --- fused heavy pass: relation + normalize + exp + Z-scale, one HBM write ---
    rel_call = pl.pallas_call(
        functools.partial(_relation_kernel, inv_T=inv_T),
        grid=(n_tiles,),
        in_specs=[
            pl.BlockSpec(memory_space=pltpu.MemorySpace.SMEM),   # [1/Z1, 1/Z2]
            w_spec,   # weight_v2 (for out_v1)
            w_spec,   # weight_v1 (for out_v2)
            a_spec,   # anchor_v2
            a_spec,   # anchor_v1
        ],
        out_specs=[o_spec, o_spec],
        out_shape=[jax.ShapeDtypeStruct((B, B, Kp1, D), f32),
                   jax.ShapeDtypeStruct((B, B, Kp1, D), f32)],
        compiler_params=pltpu.CompilerParams(
            dimension_semantics=("parallel",),
            vmem_limit_bytes=vmem_budget),
    )
    out_v1, out_v2 = rel_call(inv_z, weight_v2, weight_v1, anchor_v2, anchor_v1)

    # --- memory update (both views fused into one call); scatter in plain JAX ---
    upd_call = pl.pallas_call(
        functools.partial(_mem_update_kernel, momentum=float(momentum)),
        out_shape=[jax.ShapeDtypeStruct((B, D), f32),
                   jax.ShapeDtypeStruct((B, D), f32)],
    )
    updated_v1, updated_v2 = upd_call(anchor_v1, anchor_v2,
                                      v1.astype(f32), v2.astype(f32))
    new_memory_v1 = memory_v1.at[y].set(updated_v1.astype(memory_v1.dtype))
    new_memory_v2 = memory_v2.at[y].set(updated_v2.astype(memory_v2.dtype))

    out_v1 = out_v1.reshape(B * B, Kp1, D)
    out_v2 = out_v2.reshape(B * B, Kp1, D)
    return out_v1, out_v2, new_memory_v1, new_memory_v2, Z1, Z2


if __name__ == "__main__":
    key = jax.random.PRNGKey(0)
    inputSize = 32      # feature dim
    outputSize = 64     # memory size (nLem)
    K = 7               # nce_k -> K+1 = 8 samples per anchor
    B = 4               # batch size
    T = 0.05
    momentum = 0.5

    k1, k2, k3, k4, k5, k6 = jax.random.split(key, 6)

    # deterministic buffer init mirroring the module's __init__
    stdv = 1.0 / math.sqrt(inputSize / 3.0)
    mem_v1 = jax.random.uniform(k1, (outputSize, inputSize), jnp.float32) * (2 * stdv) - stdv
    mem_v1 = mem_v1 / jnp.sqrt(jnp.sum(mem_v1 ** 2, axis=1, keepdims=True))
    mem_v2 = jax.random.uniform(k2, (outputSize, inputSize), jnp.float32) * (2 * stdv) - stdv
    mem_v2 = mem_v2 / jnp.sqrt(jnp.sum(mem_v2 ** 2, axis=1, keepdims=True))

    v1 = jax.random.normal(k3, (B, inputSize), jnp.float32)
    v2 = jax.random.normal(k4, (B, inputSize), jnp.float32)
    y = jax.random.randint(k5, (B,), 0, outputSize)
    # TODO(synk): AliasMethod multinomial draw is host-side RNG bookkeeping; we
    # supply deterministic negative indices instead (uniform unigrams anyway).
    idx = jax.random.randint(k6, (B, K + 1), 0, outputSize)
    idx = idx.at[:, 0].set(y)   # column 0 holds the positive index, as in the module

    out_v1, out_v2, new_m1, new_m2, Z1, Z2 = contrast_memory_forward(
        v1, v2, y, idx, mem_v1, mem_v2, K=K, T=T, momentum=momentum)
    jax.block_until_ready((out_v1, out_v2, new_m1, new_m2, Z1, Z2))

    # quiet pure-JAX reference sanity check (no printing on success)
    def _ref_out(weight, anchor):
        rel = weight[:, None, :, :] - anchor[None, :, None, :] + 1e-6
        nrm = jnp.maximum(jnp.sqrt(jnp.sum(rel ** 2, axis=-1, keepdims=True)), 1e-12)
        return jnp.exp((rel / nrm) / T)

    w2 = mem_v2[idx.reshape(-1)].reshape(B, K + 1, inputSize)
    w1 = mem_v1[idx.reshape(-1)].reshape(B, K + 1, inputSize)
    e1_ref = _ref_out(w2, mem_v2[y])
    e2_ref = _ref_out(w1, mem_v1[y])
    o1_ref = (e1_ref / (e1_ref.mean() * outputSize)).reshape(B * B, K + 1, inputSize)
    o2_ref = (e2_ref / (e2_ref.mean() * outputSize)).reshape(B * B, K + 1, inputSize)
    assert jnp.allclose(out_v1, o1_ref, rtol=2e-4, atol=2e-4)
    assert jnp.allclose(out_v2, o2_ref, rtol=2e-4, atol=2e-4)

    up1 = momentum * mem_v1[y] + (1 - momentum) * v1
    up1 = up1 / jnp.sqrt(jnp.sum(up1 ** 2, axis=1, keepdims=True))
    assert jnp.allclose(new_m1[y], up1, rtol=1e-5, atol=1e-5)
    up2 = momentum * mem_v2[y] + (1 - momentum) * v2
    up2 = up2 / jnp.sqrt(jnp.sum(up2 ** 2, axis=1, keepdims=True))
    assert jnp.allclose(new_m2[y], up2, rtol=1e-5, atol=1e-5)

    print("KERNEL_OK")
</pallas_src>

<mosaic_0001>
module attributes {stable_mosaic.version = 11 : i64} {
  func.func @_zsum_kernel(%arg0: i32, %arg1: memref<4x8x32xf32, #tpu.memory_space<vmem>>, %arg2: memref<4x8x32xf32, #tpu.memory_space<vmem>>, %arg3: memref<4x32xf32, #tpu.memory_space<vmem>>, %arg4: memref<4x32xf32, #tpu.memory_space<vmem>>, %arg5: memref<1x1xf32, #tpu.memory_space<vmem>>, %arg6: memref<1x1xf32, #tpu.memory_space<vmem>>) attributes {dimension_semantics = [#tpu.dimension_semantics<arbitrary>], iteration_bounds = array<i64: 1>, scalar_prefetch = 0 : i64, scratch_operands = 0 : i64, tpu.core_type = #tpu.core_type<tc>, window_params = [{transform_indices = @transform_0, window_bounds = array<i64: 4, 8, 32>}, {transform_indices = @transform_1, window_bounds = array<i64: 4, 8, 32>}, {pipeline_mode = #tpu.pipeline_mode<synchronous>, transform_indices = @transform_2, window_bounds = array<i64: 4, 32>}, {pipeline_mode = #tpu.pipeline_mode<synchronous>, transform_indices = @transform_3, window_bounds = array<i64: 4, 32>}, {pipeline_mode = #tpu.pipeline_mode<synchronous>, transform_indices = @transform_4, window_bounds = array<i64: 1, 1>}, {pipeline_mode = #tpu.pipeline_mode<synchronous>, transform_indices = @transform_5, window_bounds = array<i64: 1, 1>}]} {
    %c0_i32 = arith.constant 0 : i32
    %0 = arith.cmpi eq, %arg0, %c0_i32 : i32
    %1 = arith.extui %0 : i1 to i32
    %c0_i32_0 = arith.constant 0 : i32
    %2 = arith.cmpi ne, %1, %c0_i32_0 : i32
    scf.if %2 {
      %cst_27 = arith.constant 0.000000e+00 : f32
      %59 = vector.broadcast %cst_27 : f32 to vector<1x1xf32>
      %c0_28 = arith.constant 0 : index
      %c0_29 = arith.constant 0 : index
      %60 = vector.load %arg5[%c0_28, %c0_29] : memref<1x1xf32, #tpu.memory_space<vmem>>, vector<1x1xf32>
      tpu.vector_store %arg5[%c0_28, %c0_29], %59 {strides = array<i32>} : memref<1x1xf32, #tpu.memory_space<vmem>>, vector<1x1xf32>,
      %cst_30 = arith.constant 0.000000e+00 : f32
      %61 = vector.broadcast %cst_30 : f32 to vector<1x1xf32>
      %c0_31 = arith.constant 0 : index
      %c0_32 = arith.constant 0 : index
      %62 = vector.load %arg6[%c0_31, %c0_32] : memref<1x1xf32, #tpu.memory_space<vmem>>, vector<1x1xf32>
      tpu.vector_store %arg6[%c0_31, %c0_32], %61 {strides = array<i32>} : memref<1x1xf32, #tpu.memory_space<vmem>>, vector<1x1xf32>,
    } else {
    }
    %c0 = arith.constant 0 : index
    %c0_1 = arith.constant 0 : index
    %3 = vector.load %arg5[%c0, %c0_1] : memref<1x1xf32, #tpu.memory_space<vmem>>, vector<1x1xf32>
    %c0_2 = arith.constant 0 : index
    %c0_3 = arith.constant 0 : index
    %c0_4 = arith.constant 0 : index
    %4 = vector.load %arg1[%c0_2, %c0_3, %c0_4] : memref<4x8x32xf32, #tpu.memory_space<vmem>>, vector<4x8x32xf32>
    %c0_5 = arith.constant 0 : index
    %c0_6 = arith.constant 0 : index
    %5 = vector.load %arg3[%c0_5, %c0_6] : memref<4x32xf32, #tpu.memory_space<vmem>>, vector<4x32xf32>
    %6 = vector.shape_cast %4 : vector<4x8x32xf32> to vector<4x1x8x32xf32>
    %7 = vector.shape_cast %5 : vector<4x32xf32> to vector<1x4x1x32xf32>
    %8 = vector.broadcast %6 : vector<4x1x8x32xf32> to vector<4x4x8x32xf32>
    %9 = vector.broadcast %7 : vector<1x4x1x32xf32> to vector<4x4x8x32xf32>
    %10 = arith.subf %8, %9 : vector<4x4x8x32xf32>
    %cst = arith.constant 9.99999997E-7 : f32
    %11 = vector.broadcast %cst : f32 to vector<4x4x8x32xf32>
    %12 = arith.addf %10, %11 : vector<4x4x8x32xf32>
    %13 = arith.mulf %12, %12 : vector<4x4x8x32xf32>
    %cst_7 = arith.constant dense<0.000000e+00> : vector<4x4x8xf32>
    %14 = vector.multi_reduction <add>, %13, %cst_7 [3] : vector<4x4x8x32xf32> to vector<4x4x8xf32>
    %15 = vector.shape_cast %14 : vector<4x4x8xf32> to vector<4x4x8x1xf32>
    %cst_8 = arith.constant 1.000000e-24 : f32
    %16 = vector.broadcast %cst_8 : f32 to vector<4x4x8x1xf32>
    %17 = arith.maximumf %15, %16 : vector<4x4x8x1xf32>
    %18 = math.rsqrt %17 : vector<4x4x8x1xf32>
    %cst_9 = arith.constant 2.000000e+01 : f32
    %19 = vector.broadcast %cst_9 : f32 to vector<4x4x8x1xf32>
    %20 = arith.mulf %18, %19 : vector<4x4x8x1xf32>
    %21 = vector.broadcast %20 : vector<4x4x8x1xf32> to vector<4x4x8x32xf32>
    %22 = arith.mulf %12, %21 : vector<4x4x8x32xf32>
    %23 = math.exp %22 : vector<4x4x8x32xf32>
    %24 = vector.shape_cast %23 : vector<4x4x8x32xf32> to vector<1x4x4x8x32xf32>
    %cst_10 = arith.constant dense<0.000000e+00> : vector<1xf32>
    %25 = vector.multi_reduction <add>, %24, %cst_10 [1, 2, 3, 4] : vector<1x4x4x8x32xf32> to vector<1xf32>
    %26 = vector.shape_cast %25 : vector<1xf32> to vector<1x1x1x1x1xf32>
    %27 = vector.extract %26[0, 0, 0, 0, 0] : f32 from vector<1x1x1x1x1xf32>
    %28 = vector.broadcast %27 : f32 to vector<1x1xf32>
    %29 = arith.addf %3, %28 : vector<1x1xf32>
    %c0_11 = arith.constant 0 : index
    %c0_12 = arith.constant 0 : index
    %30 = vector.load %arg5[%c0_11, %c0_12] : memref<1x1xf32, #tpu.memory_space<vmem>>, vector<1x1xf32>
    tpu.vector_store %arg5[%c0_11, %c0_12], %29 {strides = array<i32>} : memref<1x1xf32, #tpu.memory_space<vmem>>, vector<1x1xf32>,
    %c0_13 = arith.constant 0 : index
    %c0_14 = arith.constant 0 : index
    %31 = vector.load %arg6[%c0_13, %c0_14] : memref<1x1xf32, #tpu.memory_space<vmem>>, vector<1x1xf32>
    %c0_15 = arith.constant 0 : index
    %c0_16 = arith.constant 0 : index
    %c0_17 = arith.constant 0 : index
    %32 = vector.load %arg2[%c0_15, %c0_16, %c0_17] : memref<4x8x32xf32, #tpu.memory_space<vmem>>, vector<4x8x32xf32>
    %c0_18 = arith.constant 0 : index
    %c0_19 = arith.constant 0 : index
    %33 = vector.load %arg4[%c0_18, %c0_19] : memref<4x32xf32, #tpu.memory_space<vmem>>, vector<4x32xf32>
    %34 = vector.shape_cast %32 : vector<4x8x32xf32> to vector<4x1x8x32xf32>
    %35 = vector.shape_cast %33 : vector<4x32xf32> to vector<1x4x1x32xf32>
    %36 = vector.broadcast %34 : vector<4x1x8x32xf32> to vector<4x4x8x32xf32>
    %37 = vector.broadcast %35 : vector<1x4x1x32xf32> to vector<4x4x8x32xf32>
    %38 = arith.subf %36, %37 : vector<4x4x8x32xf32>
    %cst_20 = arith.constant 9.99999997E-7 : f32
    %39 = vector.broadcast %cst_20 : f32 to vector<4x4x8x32xf32>
    %40 = arith.addf %38, %39 : vector<4x4x8x32xf32>
    %41 = arith.mulf %40, %40 : vector<4x4x8x32xf32>
    %cst_21 = arith.constant dense<0.000000e+00> : vector<4x4x8xf32>
    %42 = vector.multi_reduction <add>, %41, %cst_21 [3] : vector<4x4x8x32xf32> to vector<4x4x8xf32>
    %43 = vector.shape_cast %42 : vector<4x4x8xf32> to vector<4x4x8x1xf32>
    %cst_22 = arith.constant 1.000000e-24 : f32
    %44 = vector.broadcast %cst_22 : f32 to vector<4x4x8x1xf32>
    %45 = arith.maximumf %43, %44 : vector<4x4x8x1xf32>
    %46 = math.rsqrt %45 : vector<4x4x8x1xf32>
    %cst_23 = arith.constant 2.000000e+01 : f32
    %47 = vector.broadcast %cst_23 : f32 to vector<4x4x8x1xf32>
    %48 = arith.mulf %46, %47 : vector<4x4x8x1xf32>
    %49 = vector.broadcast %48 : vector<4x4x8x1xf32> to vector<4x4x8x32xf32>
    %50 = arith.mulf %40, %49 : vector<4x4x8x32xf32>
    %51 = math.exp %50 : vector<4x4x8x32xf32>
    %52 = vector.shape_cast %51 : vector<4x4x8x32xf32> to vector<1x4x4x8x32xf32>
    %cst_24 = arith.constant dense<0.000000e+00> : vector<1xf32>
    %53 = vector.multi_reduction <add>, %52, %cst_24 [1, 2, 3, 4] : vector<1x4x4x8x32xf32> to vector<1xf32>
    %54 = vector.shape_cast %53 : vector<1xf32> to vector<1x1x1x1x1xf32>
    %55 = vector.extract %54[0, 0, 0, 0, 0] : f32 from vector<1x1x1x1x1xf32>
    %56 = vector.broadcast %55 : f32 to vector<1x1xf32>
    %57 = arith.addf %31, %56 : vector<1x1xf32>
    %c0_25 = arith.constant 0 : index
    %c0_26 = arith.constant 0 : index
    %58 = vector.load %arg6[%c0_25, %c0_26] : memref<1x1xf32, #tpu.memory_space<vmem>>, vector<1x1xf32>
    tpu.vector_store %arg6[%c0_25, %c0_26], %57 {strides = array<i32>} : memref<1x1xf32, #tpu.memory_space<vmem>>, vector<1x1xf32>,
    return
  }
  func.func @transform_0(%arg0: i32) -> (i32, i32, i32) {
    %c0_i32 = arith.constant 0 : i32
    %c0_i32_0 = arith.constant 0 : i32
    %c0_i32_1 = arith.constant 0 : i32
    return %arg0, %c0_i32, %c0_i32_0 : i32, i32, i32
  }
  func.func @transform_1(%arg0: i32) -> (i32, i32, i32) {
    %c0_i32 = arith.constant 0 : i32
    %c0_i32_0 = arith.constant 0 : i32
    %c0_i32_1 = arith.constant 0 : i32
    return %arg0, %c0_i32, %c0_i32_0 : i32, i32, i32
  }
  func.func @transform_2(%arg0: i32) -> (i32, i32) {
    %c0_i32 = arith.constant 0 : i32
    %c0_i32_0 = arith.constant 0 : i32
    %c0_i32_1 = arith.constant 0 : i32
    return %c0_i32, %c0_i32_0 : i32, i32
  }
  func.func @transform_3(%arg0: i32) -> (i32, i32) {
    %c0_i32 = arith.constant 0 : i32
    %c0_i32_0 = arith.constant 0 : i32
    %c0_i32_1 = arith.constant 0 : i32
    return %c0_i32, %c0_i32_0 : i32, i32
  }
  func.func @transform_4(%arg0: i32) -> (i32, i32) {
    %c0_i32 = arith.constant 0 : i32
    %c0_i32_0 = arith.constant 0 : i32
    %c0_i32_1 = arith.constant 0 : i32
    return %c0_i32, %c0_i32_0 : i32, i32
  }
  func.func @transform_5(%arg0: i32) -> (i32, i32) {
    %c0_i32 = arith.constant 0 : i32
    %c0_i32_0 = arith.constant 0 : i32
    %c0_i32_1 = arith.constant 0 : i32
    return %c0_i32, %c0_i32_0 : i32, i32
  }
}

</mosaic_0001>

<llo_original>
// kernel: tpu_custom_call.1
$region0: #{tpu_custom_call.1}
  #allocation0 [shape = 'u32[]', space=smem, size = 0x4, offset = 0x4, fixed_abs, tag = 'smem constant byte address 0x4 - core index']
  #allocation1 [shape = 'u32[144,128]{1,0:T(1,128)}', space=vmem, size = 0x12000, scoped, tag = 'internal scratch']
  %s0 = inlined_call_operand.hbm [shape: f32[4,8,32], index: 0, kind: input, shape index: {}]
  %s1 = inlined_call_operand.hbm [shape: f32[4,8,32], index: 1, kind: input, shape index: {}]
  %s2 = inlined_call_operand.vmem [shape: f32[4,32], index: 2, kind: input, shape index: {}]
  %s3 = inlined_call_operand.vmem [shape: f32[4,32], index: 3, kind: input, shape index: {}]
  %s4 = inlined_call_operand.hbm [shape: f32[1,1], index: 4, kind: output, shape index: {0}]
  %s5 = inlined_call_operand.hbm [shape: f32[1,1], index: 5, kind: output, shape index: {1}]
  %6 = xla_tuple %s4, %s5
  %s7 = sld [smem:[#allocation0]]
  $region46: #{tpu_custom_call.1} parent=0
    _
  %s9 = ssub.s32 1, %s7
  %s10 = scalar_select 0, %s9, %s7
  $region1: #{tpu_custom_call.1} parent=0
    #allocation2 [shape = 'u8[16384]{0}', space=vmem, size = 0x4000, scoped, tag = 'input window, operand 0, single buffered']
    #allocation3 [shape = 's32[1]{0}', space=sflag, size = 0x4, scoped, tag = 'scoped memory for tpu_custom_call.1']
    #allocation4 [shape = 's32[1]{0}', space=sflag, size = 0x4, scoped, tag = 'scoped memory for tpu_custom_call.1']
    #allocation5 [shape = 'u8[16384]{0}', space=vmem, size = 0x4000, scoped, tag = 'input window, operand 1, single buffered']
    #allocation6 [shape = 's32[1]{0}', space=sflag, size = 0x4, scoped, tag = 'scoped memory for tpu_custom_call.1']
    #allocation7 [shape = 'u8[512]{0}', space=vmem, size = 0x400, scoped, tag = 'output window, operand 0, single buffered']
    #allocation8 [shape = 'u8[512]{0}', space=vmem, size = 0x400, scoped, tag = 'output window, operand 1, single buffered']
    #allocation9 [shape = 's32[1]{0}', space=sflag, size = 0x4, scoped, tag = 'scoped memory for tpu_custom_call.1']
    %11 = vsyncpa [#allocation3], 0
    %12 = vsyncpa [#allocation6], 0
    %13 = vsyncpa [#allocation4], 0
    %14 = vsyncpa [#allocation9], 0
    // Predicated region
    $region2: #{tpu_custom_call.1} parent=1 // pred_check
      _
    $region3: #{tpu_custom_call.1} parent=1 // pred_check_branch
      %16 = sbr.rel (0) target = $region5
    $region4: #{tpu_custom_call.1} parent=1 // pred_region
      %s18 = ssub.s32 512, 512
      %19 = vsyncadd [#allocation3], %s18
      %s20 = sshll.u32 [#allocation2], 4
      %s21 = int_to_ptr.vmem [resolvable:$true] %s20
      %26 = dma.hbm_to_vmem [thread:$0]  %s0, 512, %s21, [#allocation3], 128, 128, 8
    $region5: #{tpu_custom_call.1} parent=1 // pred_fallthru
      _
    // Predicated region
    $region6: #{tpu_custom_call.1} parent=1 // pred_check
      _
    $region7: #{tpu_custom_call.1} parent=1 // pred_check_branch
      %28 = sbr.rel (0) target = $region9
    $region8: #{tpu_custom_call.1} parent=1 // pred_region
      %s30 = ssub.s32 512, 512
      %31 = vsyncadd [#allocation6], %s30
      %s32 = sshll.u32 [#allocation5], 4
      %s33 = int_to_ptr.vmem [resolvable:$true] %s32
      %38 = dma.hbm_to_vmem [thread:$0]  %s1, 512, %s33, [#allocation6], 128, 128, 8
    $region9: #{tpu_custom_call.1} parent=1 // pred_fallthru
      _
    // Predicated region
    $region10: #{tpu_custom_call.1} parent=1 // pred_check
      _
    $region11: #{tpu_custom_call.1} parent=1 // pred_check_branch
      %40 = sbr.rel (0) target = $region13
    $region12: #{tpu_custom_call.1} parent=1 // pred_region
      _
    $region13: #{tpu_custom_call.1} parent=1 // pred_fallthru
      _
    // Predicated region
    $region14: #{tpu_custom_call.1} parent=1 // pred_check
      _
    $region15: #{tpu_custom_call.1} parent=1 // pred_check_branch
      %42 = sbr.rel (0) target = $region17
    $region16: #{tpu_custom_call.1} parent=1 // pred_region
      _
    $region17: #{tpu_custom_call.1} parent=1 // pred_fallthru
      _
    // Predicated region
    $region18: #{tpu_custom_call.1} parent=1 // pred_check
      _
    $region19: #{tpu_custom_call.1} parent=1 // pred_check_branch
      %44 = sbr.rel (0) target = $region21
    $region20: #{tpu_custom_call.1} parent=1 // pred_region
      %45 = dma.done [#allocation3], 512
    $region21: #{tpu_custom_call.1} parent=1 // pred_fallthru
      _
    // Predicated region
    $region22: #{tpu_custom_call.1} parent=1 // pred_check
      _
    $region23: #{tpu_custom_call.1} parent=1 // pred_check_branch
      %47 = sbr.rel (0) target = $region25
    $region24: #{tpu_custom_call.1} parent=1 // pred_region
      %48 = dma.done [#allocation6], 512
    $region25: #{tpu_custom_call.1} parent=1 // pred_fallthru
      _
    %p49 = scmp.eq.s32.totalorder 0, 0
    // Predicated region
    $region26: #{tpu_custom_call.1} parent=1 // pred_check
      %p50 = pneg %p49
    $region27: #{tpu_custom_call.1} parent=1 // pred_check_branch
      %52 = sbr.rel (%p50) target = $region29
    $region28: #{tpu_custom_call.1} parent=1 // pred_region
      %vm53 = vcmask 0
      %54 = vst.msk [vmem:[#allocation7] sm:$0x1] %vm53, 0.0
      %55 = vst.msk [vmem:[#allocation8] sm:$0x1] %vm53, 0.0
    $region29: #{tpu_custom_call.1} parent=1 // pred_fallthru
      _
    %v56 = vld [vmem:[#allocation7] sm:$0x1]
    %v57 = vld [vmem:[#allocation2] sm:$0xff]
    %v58 = vld [vmem:[#allocation2 + $0x8] sm:$0xff]
    %v59 = vld [vmem:[#allocation2 + $0x10] sm:$0xff]
    %v60 = vld [vmem:[#allocation2 + $0x18] sm:$0xff]
    %v61 = vld [vmem:[%s2] sm:$0xf]
    %v64 = vunpack.c.l.s4 1966171168
    %v65 = vunpack.c.0.s8 %v64
    %v66 = vlaneseq
    %v67 = vshrl.u32 %v66, 7
    %v68 = vsub.s32 %v65, %v67
    %v69 = vrot.slane %v61, %v68
    %v70 = vcombine.high %v69, %v69
    %v72 = vunpack.c.l.s4 1966171168
    %v73 = vunpack.c.0.s8 %v72
    %v74 = vlaneseq
    %v75 = vshrl.u32 %v74, 7
    %v76 = vsub.s32 %v73, %v75
    %v77 = vrot.slane %v69, %v76
    %v79 = vunpack.c.l.s4 1966171168
    %v80 = vunpack.c.0.s8 %v79
    %v81 = vlaneseq
    %v82 = vshrl.u32 %v81, 7
    %v83 = vsub.s32 %v80, %v82
    %v84 = vrot.slane %v70, %v83
    %v85 = vcombine.high %v77, %v77
    %v86 = vcombine.high %v84, %v84
    %v87 = vlaneseq
    %v88 = vshrl.u32 %v87, 7
    %v89 = vsub.s32 0, %v88
    %v90 = vrot.slane %v77, %v89
    %v91 = vlaneseq
    %v92 = vshrl.u32 %v91, 7
    %v93 = vsub.s32 0, %v92
    %v94 = vrot.slane %v84, %v93
    %v95 = vlaneseq
    %v96 = vshrl.u32 %v95, 7
    %v97 = vsub.s32 0, %v96
    %v98 = vrot.slane %v85, %v97
    %v99 = vlaneseq
    %v100 = vshrl.u32 %v99, 7
    %v101 = vsub.s32 0, %v100
    %v102 = vrot.slane %v86, %v101
    %v107 = vsub.f32 %v57, %v90
    %v108 = vsub.f32 %v57, %v94
    %v109 = vsub.f32 %v57, %v98
    %v110 = vsub.f32 %v57, %v102
    %v111 = vsub.f32 %v58, %v90
    %v112 = vsub.f32 %v58, %v94
    %v113 = vsub.f32 %v58, %v98
    %v114 = vsub.f32 %v58, %v102
    %v115 = vsub.f32 %v59, %v90
    %v116 = vsub.f32 %v59, %v94
    %v117 = vsub.f32 %v59, %v98
    %v118 = vsub.f32 %v59, %v102
    %v119 = vsub.f32 %v60, %v90
    %v120 = vsub.f32 %v60, %v94
    %v121 = vsub.f32 %v60, %v98
    %v122 = vsub.f32 %v60, %v102
    %v123 = vadd.f32 %v107, 1e-06
    %v124 = vadd.f32 %v108, 1e-06
    %v125 = vadd.f32 %v109, 1e-06
    %v126 = vadd.f32 %v110, 1e-06
    %v127 = vadd.f32 %v111, 1e-06
    %v128 = vadd.f32 %v112, 1e-06
    %v129 = vadd.f32 %v113, 1e-06
    %v130 = vadd.f32 %v114, 1e-06
    %v131 = vadd.f32 %v115, 1e-06
    %v132 = vadd.f32 %v116, 1e-06
    %v133 = vadd.f32 %v117, 1e-06
    %v134 = vadd.f32 %v118, 1e-06
    %v135 = vadd.f32 %v119, 1e-06
    %v136 = vadd.f32 %v120, 1e-06
    %v137 = vadd.f32 %v121, 1e-06
    %v138 = vadd.f32 %v122, 1e-06
    %v139 = vmul.f32 %v123, %v123
    %v140 = vmul.f32 %v124, %v124
    %v141 = vmul.f32 %v125, %v125
    %v142 = vmul.f32 %v126, %v126
    %v143 = vmul.f32 %v127, %v127
    %v144 = vmul.f32 %v128, %v128
    %v145 = vmul.f32 %v129, %v129
    %v146 = vmul.f32 %v130, %v130
    %v147 = vmul.f32 %v131, %v131
    %v148 = vmul.f32 %v132, %v132
    %v149 = vmul.f32 %v133, %v133
    %v150 = vmul.f32 %v134, %v134
    %v151 = vmul.f32 %v135, %v135
    %v152 = vmul.f32 %v136, %v136
    %v153 = vmul.f32 %v137, %v137
    %v154 = vmul.f32 %v138, %v138
    %vm155 = vcmask 261120
    %v156 = vsel %vm155, %v139, 0.0
    %157 = vadd.xlane.f32.xlu0 %v156
    %v158 = vpop.xlane.xlu0 %157
    %v159 = vsel %vm155, %v140, 0.0
    %160 = vadd.xlane.f32.xlu0 %v159
    %v161 = vpop.xlane.xlu0 %160
    %v162 = vsel %vm155, %v141, 0.0
    %163 = vadd.xlane.f32.xlu0 %v162
    %v164 = vpop.xlane.xlu0 %163
    %v165 = vsel %vm155, %v142, 0.0
    %166 = vadd.xlane.f32.xlu0 %v165
    %v167 = vpop.xlane.xlu0 %166
    %v168 = vsel %vm155, %v143, 0.0
    %169 = vadd.xlane.f32.xlu0 %v168
    %v170 = vpop.xlane.xlu0 %169
    %v171 = vsel %vm155, %v144, 0.0
    %172 = vadd.xlane.f32.xlu0 %v171
    %v173 = vpop.xlane.xlu0 %172
    %v174 = vsel %vm155, %v145, 0.0
    %175 = vadd.xlane.f32.xlu0 %v174
    %v176 = vpop.xlane.xlu0 %175
    %v177 = vsel %vm155, %v146, 0.0
    %178 = vadd.xlane.f32.xlu0 %v177
    %v179 = vpop.xlane.xlu0 %178
    %v180 = vsel %vm155, %v147, 0.0
    %181 = vadd.xlane.f32.xlu0 %v180
    %v182 = vpop.xlane.xlu0 %181
    %v183 = vsel %vm155, %v148, 0.0
    %184 = vadd.xlane.f32.xlu0 %v183
    %v185 = vpop.xlane.xlu0 %184
    %v186 = vsel %vm155, %v149, 0.0
    %187 = vadd.xlane.f32.xlu0 %v186
    %v188 = vpop.xlane.xlu0 %187
    %v189 = vsel %vm155, %v150, 0.0
    %190 = vadd.xlane.f32.xlu0 %v189
    %v191 = vpop.xlane.xlu0 %190
    %v192 = vsel %vm155, %v151, 0.0
    %193 = vadd.xlane.f32.xlu0 %v192
    %v194 = vpop.xlane.xlu0 %193
    %v195 = vsel %vm155, %v152, 0.0
    %196 = vadd.xlane.f32.xlu0 %v195
    %v197 = vpop.xlane.xlu0 %196
    %v198 = vsel %vm155, %v153, 0.0
    %199 = vadd.xlane.f32.xlu0 %v198
    %v200 = vpop.xlane.xlu0 %199
    %v201 = vsel %vm155, %v154, 0.0
    %202 = vadd.xlane.f32.xlu0 %v201
    %v203 = vpop.xlane.xlu0 %202
    %v204 = vmax.f32 %v158, 1e-24
    %v205 = vmax.f32 %v161, 1e-24
    %v206 = vmax.f32 %v164, 1e-24
    %v207 = vmax.f32 %v167, 1e-24
    %v208 = vmax.f32 %v170, 1e-24
    %v209 = vmax.f32 %v173, 1e-24
    %v210 = vmax.f32 %v176, 1e-24
    %v211 = vmax.f32 %v179, 1e-24
    %v212 = vmax.f32 %v182, 1e-24
    %v213 = vmax.f32 %v185, 1e-24
    %v214 = vmax.f32 %v188, 1e-24
    %v215 = vmax.f32 %v191, 1e-24
    %v216 = vmax.f32 %v194, 1e-24
    %v217 = vmax.f32 %v197, 1e-24
    %v218 = vmax.f32 %v200, 1e-24
    %v219 = vmax.f32 %v203, 1e-24
    %v220 = vrsqrt.pop %v204
    %v221 = vrsqrt.pop %v205
    %v222 = vrsqrt.pop %v206
    %v223 = vrsqrt.pop %v207
    %v224 = vrsqrt.pop %v208
    %v225 = vrsqrt.pop %v209
    %v226 = vrsqrt.pop %v210
    %v227 = vrsqrt.pop %v211
    %v228 = vrsqrt.pop %v212
    %v229 = vrsqrt.pop %v213
    %v230 = vrsqrt.pop %v214
    %v231 = vrsqrt.pop %v215
    %v232 = vrsqrt.pop %v216
    %v233 = vrsqrt.pop %v217
    %v234 = vrsqrt.pop %v218
    %v235 = vrsqrt.pop %v219
    %v236 = vmul.f32 %v220, 20.0
    %v237 = vmul.f32 %v221, 20.0
    %v238 = vmul.f32 %v222, 20.0
    %v239 = vmul.f32 %v223, 20.0
    %v240 = vmul.f32 %v224, 20.0
    %v241 = vmul.f32 %v225, 20.0
    %v242 = vmul.f32 %v226, 20.0
    %v243 = vmul.f32 %v227, 20.0
    %v244 = vmul.f32 %v228, 20.0
    %v245 = vmul.f32 %v229, 20.0
    %v246 = vmul.f32 %v230, 20.0
    %v247 = vmul.f32 %v231, 20.0
    %v248 = vmul.f32 %v232, 20.0
    %v249 = vmul.f32 %v233, 20.0
    %v250 = vmul.f32 %v234, 20.0
    %v251 = vmul.f32 %v235, 20.0
    %v252 = vmul.f32 %v123, %v236
    %v253 = vmul.f32 %v124, %v237
    %v254 = vmul.f32 %v125, %v238
    %v255 = vmul.f32 %v126, %v239
    %v256 = vmul.f32 %v127, %v240
    %v257 = vmul.f32 %v128, %v241
    %v258 = vmul.f32 %v129, %v242
    %v259 = vmul.f32 %v130, %v243
    %v260 = vmul.f32 %v131, %v244
    %v261 = vmul.f32 %v132, %v245
    %v262 = vmul.f32 %v133, %v246
    %v263 = vmul.f32 %v134, %v247
    %v264 = vmul.f32 %v135, %v248
    %v265 = vmul.f32 %v136, %v249
    %v266 = vmul.f32 %v137, %v250
    %v267 = vmul.f32 %v138, %v251
    %v268 = vmul.f32 %v252, 1.442695
    %v269 = vpow.pop %v268
    %v270 = vmul.f32 %v253, 1.442695
    %v271 = vpow.pop %v270
    %v272 = vmul.f32 %v254, 1.442695
    %v273 = vpow.pop %v272
    %v274 = vmul.f32 %v255, 1.442695
    %v275 = vpow.pop %v274
    %v276 = vmul.f32 %v256, 1.442695
    %v277 = vpow.pop %v276
    %v278 = vmul.f32 %v257, 1.442695
    %v279 = vpow.pop %v278
    %v280 = vmul.f32 %v258, 1.442695
    %v281 = vpow.pop %v280
    %v282 = vmul.f32 %v259, 1.442695
    %v283 = vpow.pop %v282
    %v284 = vmul.f32 %v260, 1.442695
    %v285 = vpow.pop %v284
    %v286 = vmul.f32 %v261, 1.442695
    %v287 = vpow.pop %v286
    %v288 = vmul.f32 %v262, 1.442695
    %v289 = vpow.pop %v288
    %v290 = vmul.f32 %v263, 1.442695
    %v291 = vpow.pop %v290
    %v292 = vmul.f32 %v264, 1.442695
    %v293 = vpow.pop %v292
    %v294 = vmul.f32 %v265, 1.442695
    %v295 = vpow.pop %v294
    %v296 = vmul.f32 %v266, 1.442695
    %v297 = vpow.pop %v296
    %v298 = vmul.f32 %v267, 1.442695
    %v299 = vpow.pop %v298
    %v300 = vsel %vm155, %v269, 0.0
    %v301 = vsel %vm155, %v271, 0.0
    %v302 = vadd.f32 %v300, %v301
    %v303 = vsel %vm155, %v273, 0.0
    %v304 = vadd.f32 %v302, %v303
    %v305 = vsel %vm155, %v275, 0.0
    %v306 = vadd.f32 %v304, %v305
    %v307 = vsel %vm155, %v277, 0.0
    %v308 = vadd.f32 %v306, %v307
    %v309 = vsel %vm155, %v279, 0.0
    %v310 = vadd.f32 %v308, %v309
    %v311 = vsel %vm155, %v281, 0.0
    %v312 = vadd.f32 %v310, %v311
    %v313 = vsel %vm155, %v283, 0.0
    %v314 = vadd.f32 %v312, %v313
    %v315 = vsel %vm155, %v285, 0.0
    %v316 = vadd.f32 %v314, %v315
    %v317 = vsel %vm155, %v287, 0.0
    %v318 = vadd.f32 %v316, %v317
    %v319 = vsel %vm155, %v289, 0.0
    %v320 = vadd.f32 %v318, %v319
    %v321 = vsel %vm155, %v291, 0.0
    %v322 = vadd.f32 %v320, %v321
    %v323 = vsel %vm155, %v293, 0.0
    %v324 = vadd.f32 %v322, %v323
    %v325 = vsel %vm155, %v295, 0.0
    %v326 = vadd.f32 %v324, %v325
    %v327 = vsel %vm155, %v297, 0.0
    %v328 = vadd.f32 %v326, %v327
    %v329 = vsel %vm155, %v299, 0.0
    %v330 = vadd.f32 %v328, %v329
    %331 = vadd.xlane.f32.xlu0 %v330
    %v332 = vpop.xlane.xlu0 %331
    %v333 = vrot.slane %v332, 4
    %v334 = vadd.f32 %v332, %v333
    %v335 = vrot.slane %v334, 2
    %v336 = vadd.f32 %v334, %v335
    %v337 = vrot.slane %v336, 1
    %v338 = vadd.f32 %v336, %v337
    %s339 = vtos %v338
    %v340 = vstv %s339
    %v341 = vadd.f32 %v56, %v340
    %vm342 = vcmask 0
    %343 = vst.msk [vmem:[#allocation7] sm:$0x1] %vm342, %v341
    %v344 = vld [vmem:[#allocation8] sm:$0x1]
    %v345 = vld [vmem:[#allocation5] sm:$0xff]
    %v346 = vld [vmem:[#allocation5 + $0x8] sm:$0xff]
    %v347 = vld [vmem:[#allocation5 + $0x10] sm:$0xff]
    %v348 = vld [vmem:[#allocation5 + $0x18] sm:$0xff]
    %v349 = vld [vmem:[%s3] sm:$0xf]
    %v352 = vunpack.c.l.s4 1966171168
    %v353 = vunpack.c.0.s8 %v352
    %v354 = vlaneseq
    %v355 = vshrl.u32 %v354, 7
    %v356 = vsub.s32 %v353, %v355
    %v357 = vrot.slane %v349, %v356
    %v358 = vcombine.high %v357, %v357
    %v360 = vunpack.c.l.s4 1966171168
    %v361 = vunpack.c.0.s8 %v360
    %v362 = vlaneseq
    %v363 = vshrl.u32 %v362, 7
    %v364 = vsub.s32 %v361, %v363
    %v365 = vrot.slane %v357, %v364
    %v367 = vunpack.c.l.s4 1966171168
    %v368 = vunpack.c.0.s8 %v367
    %v369 = vlaneseq
    %v370 = vshrl.u32 %v369, 7
    %v371 = vsub.s32 %v368, %v370
    %v372 = vrot.slane %v358, %v371
    %v373 = vcombine.high %v365, %v365
    %v374 = vcombine.high %v372, %v372
    %v375 = vlaneseq
    %v376 = vshrl.u32 %v375, 7
    %v377 = vsub.s32 0, %v376
    %v378 = vrot.slane %v365, %v377
    %v379 = vlaneseq
    %v380 = vshrl.u32 %v379, 7
    %v381 = vsub.s32 0, %v380
    %v382 = vrot.slane %v372, %v381
    %v383 = vlaneseq
    %v384 = vshrl.u32 %v383, 7
    %v385 = vsub.s32 0, %v384
    %v386 = vrot.slane %v373, %v385
    %v387 = vlaneseq
    %v388 = vshrl.u32 %v387, 7
    %v389 = vsub.s32 0, %v388
    %v390 = vrot.slane %v374, %v389
    %v395 = vsub.f32 %v345, %v378
    %v396 = vsub.f32 %v345, %v382
    %v397 = vsub.f32 %v345, %v386
    %v398 = vsub.f32 %v345, %v390
    %v399 = vsub.f32 %v346, %v378
    %v400 = vsub.f32 %v346, %v382
    %v401 = vsub.f32 %v346, %v386
    %v402 = vsub.f32 %v346, %v390
    %v403 = vsub.f32 %v347, %v378
    %v404 = vsub.f32 %v347, %v382
    %v405 = vsub.f32 %v347, %v386
    %v406 = vsub.f32 %v347, %v390
    %v407 = vsub.f32 %v348, %v378
    %v408 = vsub.f32 %v348, %v382
    %v409 = vsub.f32 %v348, %v386
    %v410 = vsub.f32 %v348, %v390
    %v411 = vadd.f32 %v395, 1e-06
    %v412 = vadd.f32 %v396, 1e-06
    %v413 = vadd.f32 %v397, 1e-06
    %v414 = vadd.f32 %v398, 1e-06
    %v415 = vadd.f32 %v399, 1e-06
    %v416 = vadd.f32 %v400, 1e-06
    %v417 = vadd.f32 %v401, 1e-06
    %v418 = vadd.f32 %v402, 1e-06
    %v419 = vadd.f32 %v403, 1e-06
    %v420 = vadd.f32 %v404, 1e-06
    %v421 = vadd.f32 %v405, 1e-06
    %v422 = vadd.f32 %v406, 1e-06
    %v423 = vadd.f32 %v407, 1e-06
    %v424 = vadd.f32 %v408, 1e-06
    %v425 = vadd.f32 %v409, 1e-06
    %v426 = vadd.f32 %v410, 1e-06
    %v427 = vmul.f32 %v411, %v411
    %v428 = vmul.f32 %v412, %v412
    %v429 = vmul.f32 %v413, %v413
    %v430 = vmul.f32 %v414, %v414
    %v431 = vmul.f32 %v415, %v415
    %v432 = vmul.f32 %v416, %v416
    %v433 = vmul.f32 %v417, %v417
    %v434 = vmul.f32 %v418, %v418
    %v435 = vmul.f32 %v419, %v419
    %v436 = vmul.f32 %v420, %v420
    %v437 = vmul.f32 %v421, %v421
    %v438 = vmul.f32 %v422, %v422
    %v439 = vmul.f32 %v423, %v423
    %v440 = vmul.f32 %v424, %v424
    %v441 = vmul.f32 %v425, %v425
    %v442 = vmul.f32 %v426, %v426
    %v443 = vsel %vm155, %v427, 0.0
    %444 = vadd.xlane.f32.xlu0 %v443
    %v445 = vpop.xlane.xlu0 %444
    %v446 = vsel %vm155, %v428, 0.0
    %447 = vadd.xlane.f32.xlu0 %v446
    %v448 = vpop.xlane.xlu0 %447
    %v449 = vsel %vm155, %v429, 0.0
    %450 = vadd.xlane.f32.xlu0 %v449
    %v451 = vpop.xlane.xlu0 %450
    %v452 = vsel %vm155, %v430, 0.0
    %453 = vadd.xlane.f32.xlu0 %v452
    %v454 = vpop.xlane.xlu0 %453
    %v455 = vsel %vm155, %v431, 0.0
    %456 = vadd.xlane.f32.xlu0 %v455
    %v457 = vpop.xlane.xlu0 %456
    %v458 = vsel %vm155, %v432, 0.0
    %459 = vadd.xlane.f32.xlu0 %v458
    %v460 = vpop.xlane.xlu0 %459
    %v461 = vsel %vm155, %v433, 0.0
    %462 = vadd.xlane.f32.xlu0 %v461
    %v463 = vpop.xlane.xlu0 %462
    %v464 = vsel %vm155, %v434, 0.0
    %465 = vadd.xlane.f32.xlu0 %v464
    %v466 = vpop.xlane.xlu0 %465
    %v467 = vsel %vm155, %v435, 0.0
    %468 = vadd.xlane.f32.xlu0 %v467
    %v469 = vpop.xlane.xlu0 %468
    %v470 = vsel %vm155, %v436, 0.0
    %471 = vadd.xlane.f32.xlu0 %v470
    %v472 = vpop.xlane.xlu0 %471
    %v473 = vsel %vm155, %v437, 0.0
    %474 = vadd.xlane.f32.xlu0 %v473
    %v475 = vpop.xlane.xlu0 %474
    %v476 = vsel %vm155, %v438, 0.0
    %477 = vadd.xlane.f32.xlu0 %v476
    %v478 = vpop.xlane.xlu0 %477
    %v479 = vsel %vm155, %v439, 0.0
    %480 = vadd.xlane.f32.xlu0 %v479
    %v481 = vpop.xlane.xlu0 %480
    %v482 = vsel %vm155, %v440, 0.0
    %483 = vadd.xlane.f32.xlu0 %v482
    %v484 = vpop.xlane.xlu0 %483
    %v485 = vsel %vm155, %v441, 0.0
    %486 = vadd.xlane.f32.xlu0 %v485
    %v487 = vpop.xlane.xlu0 %486
    %v488 = vsel %vm155, %v442, 0.0
    %489 = vadd.xlane.f32.xlu0 %v488
    %v490 = vpop.xlane.xlu0 %489
    %v491 = vmax.f32 %v445, 1e-24
    %v492 = vmax.f32 %v448, 1e-24
    %v493 = vmax.f32 %v451, 1e-24
    %v494 = vmax.f32 %v454, 1e-24
    %v495 = vmax.f32 %v457, 1e-24
    %v496 = vmax.f32 %v460, 1e-24
    %v497 = vmax.f32 %v463, 1e-24
    %v498 = vmax.f32 %v466, 1e-24
    %v499 = vmax.f32 %v469, 1e-24
    %v500 = vmax.f32 %v472, 1e-24
    %v501 = vmax.f32 %v475, 1e-24
    %v502 = vmax.f32 %v478, 1e-24
    %v503 = vmax.f32 %v481, 1e-24
    %v504 = vmax.f32 %v484, 1e-24
    %v505 = vmax.f32 %v487, 1e-24
    %v506 = vmax.f32 %v490, 1e-24
    %v507 = vrsqrt.pop %v491
    %v508 = vrsqrt.pop %v492
    %v509 = vrsqrt.pop %v493
    %v510 = vrsqrt.pop %v494
    %v511 = vrsqrt.pop %v495
    %v512 = vrsqrt.pop %v496
    %v513 = vrsqrt.pop %v497
    %v514 = vrsqrt.pop %v498
    %v515 = vrsqrt.pop %v499
    %v516 = vrsqrt.pop %v500
    %v517 = vrsqrt.pop %v501
    %v518 = vrsqrt.pop %v502
    %v519 = vrsqrt.pop %v503
    %v520 = vrsqrt.pop %v504
    %v521 = vrsqrt.pop %v505
    %v522 = vrsqrt.pop %v506
    %v523 = vmul.f32 %v507, 20.0
    %v524 = vmul.f32 %v508, 20.0
    %v525 = vmul.f32 %v509, 20.0
    %v526 = vmul.f32 %v510, 20.0
    %v527 = vmul.f32 %v511, 20.0
    %v528 = vmul.f32 %v512, 20.0
    %v529 = vmul.f32 %v513, 20.0
    %v530 = vmul.f32 %v514, 20.0
    %v531 = vmul.f32 %v515, 20.0
    %v532 = vmul.f32 %v516, 20.0
    %v533 = vmul.f32 %v517, 20.0
    %v534 = vmul.f32 %v518, 20.0
    %v535 = vmul.f32 %v519, 20.0
    %v536 = vmul.f32 %v520, 20.0
    %v537 = vmul.f32 %v521, 20.0
    %v538 = vmul.f32 %v522, 20.0
    %v539 = vmul.f32 %v411, %v523
    %v540 = vmul.f32 %v412, %v524
    %v541 = vmul.f32 %v413, %v525
    %v542 = vmul.f32 %v414, %v526
    %v543 = vmul.f32 %v415, %v527
    %v544 = vmul.f32 %v416, %v528
    %v545 = vmul.f32 %v417, %v529
    %v546 = vmul.f32 %v418, %v530
    %v547 = vmul.f32 %v419, %v531
    %v548 = vmul.f32 %v420, %v532
    %v549 = vmul.f32 %v421, %v533
    %v550 = vmul.f32 %v422, %v534
    %v551 = vmul.f32 %v423, %v535
    %v552 = vmul.f32 %v424, %v536
    %v553 = vmul.f32 %v425, %v537
    %v554 = vmul.f32 %v426, %v538
    %v555 = vmul.f32 %v539, 1.442695
    %v556 = vpow.pop %v555
    %v557 = vmul.f32 %v540, 1.442695
    %v558 = vpow.pop %v557
    %v559 = vmul.f32 %v541, 1.442695
    %v560 = vpow.pop %v559
    %v561 = vmul.f32 %v542, 1.442695
    %v562 = vpow.pop %v561
    %v563 = vmul.f32 %v543, 1.442695
    %v564 = vpow.pop %v563
    %v565 = vmul.f32 %v544, 1.442695
    %v566 = vpow.pop %v565
    %v567 = vmul.f32 %v545, 1.442695
    %v568 = vpow.pop %v567
    %v569 = vmul.f32 %v546, 1.442695
    %v570 = vpow.pop %v569
    %v571 = vmul.f32 %v547, 1.442695
    %v572 = vpow.pop %v571
    %v573 = vmul.f32 %v548, 1.442695
    %v574 = vpow.pop %v573
    %v575 = vmul.f32 %v549, 1.442695
    %v576 = vpow.pop %v575
    %v577 = vmul.f32 %v550, 1.442695
    %v578 = vpow.pop %v577
    %v579 = vmul.f32 %v551, 1.442695
    %v580 = vpow.pop %v579
    %v581 = vmul.f32 %v552, 1.442695
    %v582 = vpow.pop %v581
    %v583 = vmul.f32 %v553, 1.442695
    %v584 = vpow.pop %v583
    %v585 = vmul.f32 %v554, 1.442695
    %v586 = vpow.pop %v585
    %v587 = vsel %vm155, %v556, 0.0
    %v588 = vsel %vm155, %v558, 0.0
    %v589 = vadd.f32 %v587, %v588
    %v590 = vsel %vm155, %v560, 0.0
    %v591 = vadd.f32 %v589, %v590
    %v592 = vsel %vm155, %v562, 0.0
    %v593 = vadd.f32 %v591, %v592
    %v594 = vsel %vm155, %v564, 0.0
    %v595 = vadd.f32 %v593, %v594
    %v596 = vsel %vm155, %v566, 0.0
    %v597 = vadd.f32 %v595, %v596
    %v598 = vsel %vm155, %v568, 0.0
    %v599 = vadd.f32 %v597, %v598
    %v600 = vsel %vm155, %v570, 0.0
    %v601 = vadd.f32 %v599, %v600
    %v602 = vsel %vm155, %v572, 0.0
    %v603 = vadd.f32 %v601, %v602
    %v604 = vsel %vm155, %v574, 0.0
    %v605 = vadd.f32 %v603, %v604
    %v606 = vsel %vm155, %v576, 0.0
    %v607 = vadd.f32 %v605, %v606
    %v608 = vsel %vm155, %v578, 0.0
    %v609 = vadd.f32 %v607, %v608
    %v610 = vsel %vm155, %v580, 0.0
    %v611 = vadd.f32 %v609, %v610
    %v612 = vsel %vm155, %v582, 0.0
    %v613 = vadd.f32 %v611, %v612
    %v614 = vsel %vm155, %v584, 0.0
    %v615 = vadd.f32 %v613, %v614
    %v616 = vsel %vm155, %v586, 0.0
    %v617 = vadd.f32 %v615, %v616
    %618 = vadd.xlane.f32.xlu0 %v617
    %v619 = vpop.xlane.xlu0 %618
    %v620 = vrot.slane %v619, 4
    %v621 = vadd.f32 %v619, %v620
    %v622 = vrot.slane %v621, 2
    %v623 = vadd.f32 %v621, %v622
    %v624 = vrot.slane %v623, 1
    %v625 = vadd.f32 %v623, %v624
    %s626 = vtos %v625
    %v627 = vstv %s626
    %v628 = vadd.f32 %v344, %v627
    %629 = vst.msk [vmem:[#allocation8] sm:$0x1] %vm342, %v628
    // Predicated region
    $region30: #{tpu_custom_call.1} parent=1 // pred_check
      _
    $region31: #{tpu_custom_call.1} parent=1 // pred_check_branch
      %631 = sbr.rel (0) target = $region33
    $region32: #{tpu_custom_call.1} parent=1 // pred_region
      %s633 = ssub.s32 16, 16
      %634 = vsyncadd [#allocation4], %s633
      %s636 = sshll.u32 [#allocation7], 4
      %s637 = int_to_ptr.vmem [resolvable:$true] %s636
      %639 = dma.vmem_to_hbm [thread:$0]  %s637, 16, %s4, [#allocation4]
    $region33: #{tpu_custom_call.1} parent=1 // pred_fallthru
      _
    // Predicated region
    $region34: #{tpu_custom_call.1} parent=1 // pred_check
      _
    $region35: #{tpu_custom_call.1} parent=1 // pred_check_branch
      %641 = sbr.rel (0) target = $region37
    $region36: #{tpu_custom_call.1} parent=1 // pred_region
      %s643 = ssub.s32 16, 16
      %644 = vsyncadd [#allocation9], %s643
      %s646 = sshll.u32 [#allocation8], 4
      %s647 = int_to_ptr.vmem [resolvable:$true] %s646
      %649 = dma.vmem_to_hbm [thread:$0]  %s647, 16, %s5, [#allocation9]
    $region37: #{tpu_custom_call.1} parent=1 // pred_fallthru
      _
    // Predicated region
    $region38: #{tpu_custom_call.1} parent=1 // pred_check
      _
    $region39: #{tpu_custom_call.1} parent=1 // pred_check_branch
      %651 = sbr.rel (0) target = $region41
    $region40: #{tpu_custom_call.1} parent=1 // pred_region
      %652 = dma.done [#allocation4], 16
    $region41: #{tpu_custom_call.1} parent=1 // pred_fallthru
      _
    // Predicated region
    $region42: #{tpu_custom_call.1} parent=1 // pred_check
      _
    $region43: #{tpu_custom_call.1} parent=1 // pred_check_branch
      %654 = sbr.rel (0) target = $region45
    $region44: #{tpu_custom_call.1} parent=1 // pred_region
      %655 = dma.done [#allocation9], 16
    $region45: #{tpu_custom_call.1} parent=1 // pred_fallthru
      _
    %656 = vsyncpa [#allocation3], 1
    %657 = vsyncpa [#allocation6], 1
    %658 = vsyncpa [#allocation4], 1
    %659 = vsyncpa [#allocation9], 1

</llo_original>
